<compile_context>
chip_gen: v5e
topology: v5e:2x2
jax: 0.10.0
libtpu: 0.0.40
codegen_flags: <defaults>
</compile_context>

<pallas_src>
import functools

import jax
import jax.numpy as jnp
from jax import lax
from jax.experimental import pallas as pl
from jax.experimental.pallas import tpu as pltpu


def _round_up(x, m):
    return ((x + m - 1) // m) * m


def _make_kernel(hidden_dims, final_in):
    """Build the fused-MLP kernel for a fixed (static) layer structure.

    Kernel refs (in order):
      x_ref            : (TB, D)        f32 input tile (cast to bf16 in-kernel)
      w_refs[i]        : (d_in, d_out)  bf16 hidden-layer weights (resident)
      misc_ref         : (n+2, LPAD)    f32; row i < n  -> bias of hidden layer i
                                               row n     -> final-layer weight (length final_in)
                                               row n + 1 -> final-layer bias at [n+1, 0]
      o_ref            : (1, 1, TB)     f32 sigmoid probabilities, lane-dense
    """
    n = len(hidden_dims)

    def kernel(*refs):
        x_ref = refs[0]
        w_refs = refs[1:1 + n]
        misc_ref = refs[1 + n]
        o_ref = refs[2 + n]

        # Hidden layers: bf16 MXU operands, f32 accumulate, f32 bias add + ReLU on the VPU.
        h = x_ref[...].astype(jnp.bfloat16)
        for li, hd in enumerate(hidden_dims):
            h = jnp.dot(h, w_refs[li][...], preferred_element_type=jnp.float32)
            h = jnp.maximum(h + misc_ref[li:li + 1, :hd], 0.0)
            h = h.astype(jnp.bfloat16)

        # Final (1-unit) layer computed transposed so the result is a lane-dense (1, TB) row:
        #   z[0, b] = sum_k w_out[0, k] * h[b, k]
        w_out = misc_ref[n:n + 1, :final_in].astype(jnp.bfloat16)
        z = lax.dot_general(w_out, h, (((1,), (1,)), ((), ())),
                            preferred_element_type=jnp.float32)
        z = z + misc_ref[n + 1:n + 2, 0:1]

        # Sigmoid; exact reciprocal costs nothing measurable here and keeps sigmoid(0) == 0.5.
        p = pl.reciprocal(1.0 + jnp.exp(-z), approx=False)       # (1, TB) f32
        o_ref[...] = p[None].astype(o_ref.dtype)                 # (1, 1, TB)

    return kernel


def prepare_params(params):
    """One-time conversion of [(w, b), ...] (w: (in, out), b: (1, out)) into kernel operands."""
    hidden = params[:-1]
    w_out, b_out = params[-1]
    hidden_dims = tuple(int(w.shape[1]) for w, _ in hidden)
    n = len(hidden_dims)
    final_in = int(w_out.shape[0])

    lpad = _round_up(max(list(hidden_dims) + [final_in]), 128)
    misc = jnp.zeros((n + 2, lpad), jnp.float32)
    for i, (_, b) in enumerate(hidden):
        misc = misc.at[i, :b.size].set(b.reshape(-1).astype(jnp.float32))
    misc = misc.at[n, :final_in].set(w_out.reshape(-1).astype(jnp.float32))
    misc = misc.at[n + 1, 0].set(b_out.astype(jnp.float32).reshape(()))

    ws = tuple(w.astype(jnp.bfloat16) for w, _ in hidden)
    return {
        "hidden_dims": hidden_dims,
        "final_in": final_in,
        "ws": ws,
        "misc": misc,
    }


def sample_mlp_forward(x, prepared, *, max_tile_b=1024):
    """x: (B, D) float32. Returns (B, 1) float32 sigmoid probabilities (== SampleMLP.forward)."""
    B, D = x.shape
    hidden_dims = prepared["hidden_dims"]
    final_in = prepared["final_in"]
    ws = prepared["ws"]
    misc = prepared["misc"]

    # Single grid step unless B is huge; blocks never exceed the array (no padding needed).
    tile_b = int(min(B, max_tile_b))
    num_tiles = -(-B // tile_b)

    kernel = _make_kernel(hidden_dims, final_in)

    in_specs = [pl.BlockSpec((tile_b, D), lambda i: (i, 0))]           # x: tiled over batch
    for w in ws:                                                       # resident weights
        in_specs.append(pl.BlockSpec(w.shape, lambda i: (0, 0)))
    in_specs.append(pl.BlockSpec(misc.shape, lambda i: (0, 0)))        # packed biases / final layer

    # VMEM budget (double-buffered x/out tiles, resident operands, live activations) + headroom;
    # cap below v7x's 64 MiB physical VMEM.
    acts = D + sum(hidden_dims)
    est = (2 * tile_b * D * 4                         # x tiles, f32, double-buffered
           + 2 * tile_b * 4                           # out rows, f32, double-buffered
           + 2 * (sum(int(w.size) for w in ws) * 2 + int(misc.size) * 4)
           + tile_b * acts * 4)                       # live activations (generous: all f32)
    vmem_limit = int(min(48 * 1024 * 1024, max(16 * 1024 * 1024, 8 * est)))

    out3 = pl.pallas_call(
        kernel,
        out_shape=jax.ShapeDtypeStruct((num_tiles, 1, tile_b), jnp.float32),
        grid=(num_tiles,),
        in_specs=in_specs,
        out_specs=pl.BlockSpec((1, 1, tile_b), lambda i: (i, 0, 0)),
        compiler_params=pltpu.CompilerParams(
            dimension_semantics=(("parallel",) if num_tiles > 1 else ("arbitrary",)),
            vmem_limit_bytes=vmem_limit,
        ),
    )(x, *ws, misc)

    return out3.reshape(num_tiles * tile_b)[:B].reshape(B, 1)


def init_params(key, input_dim, hidden_dims):
    """Deterministic init mimicking nn.Linear's U(-1/sqrt(fan_in), 1/sqrt(fan_in))."""
    dims = [input_dim] + list(hidden_dims) + [1]
    params = []
    for i in range(len(dims) - 1):
        fan_in, fan_out = dims[i], dims[i + 1]
        key, kw, kb = jax.random.split(key, 3)
        bound = 1.0 / jnp.sqrt(fan_in)
        # stored as (in, out) == PyTorch weight (out, in) transposed
        w = jax.random.uniform(kw, (fan_in, fan_out), jnp.float32, -bound, bound)
        b = jax.random.uniform(kb, (1, fan_out), jnp.float32, -bound, bound)
        params.append((w, b))
    return params


def reference_forward(x, params):
    h = x
    for w, b in params[:-1]:
        h = jnp.maximum(h @ w + b, 0.0)
    w, b = params[-1]
    return jax.nn.sigmoid(h @ w + b)


if __name__ == "__main__":
    key = jax.random.PRNGKey(0)
    batch, input_dim, hidden_dims = 200, 32, (64, 32)   # non-multiple-of-128 batch, small shapes

    k_x, k_p = jax.random.split(key)
    x = jax.random.normal(k_x, (batch, input_dim), jnp.float32)
    params = init_params(k_p, input_dim, hidden_dims)

    prepared = prepare_params(params)                    # one-time weight prep (hoisted)
    out = sample_mlp_forward(x, prepared)                # single grid step for this size
    out = jax.block_until_ready(out)

    ref = reference_forward(x, params)
    assert out.shape == (batch, 1)
    # bf16 MXU operands (f32 accumulate) -> loosened tolerance vs the f32 reference.
    assert jnp.allclose(out, ref, atol=2e-2, rtol=2e-2), (
        f"mismatch vs pure-JAX reference (max abs err {jnp.max(jnp.abs(out - ref))})")

    print("KERNEL_OK")
</pallas_src>

<mosaic_0001>
module attributes {stable_mosaic.version = 11 : i64} {
  func.func @kernel(%arg0: i32, %arg1: memref<200x32xf32, #tpu.memory_space<vmem>>, %arg2: memref<32x64xbf16, #tpu.memory_space<vmem>>, %arg3: memref<64x32xbf16, #tpu.memory_space<vmem>>, %arg4: memref<4x128xf32, #tpu.memory_space<vmem>>, %arg5: memref<1x1x200xf32, #tpu.memory_space<vmem>>) attributes {dimension_semantics = [#tpu.dimension_semantics<arbitrary>], iteration_bounds = array<i64: 1>, scalar_prefetch = 0 : i64, scratch_operands = 0 : i64, tpu.core_type = #tpu.core_type<tc>, window_params = [{transform_indices = @transform_0, window_bounds = array<i64: 200, 32>}, {pipeline_mode = #tpu.pipeline_mode<synchronous>, transform_indices = @transform_1, window_bounds = array<i64: 32, 64>}, {pipeline_mode = #tpu.pipeline_mode<synchronous>, transform_indices = @transform_2, window_bounds = array<i64: 64, 32>}, {pipeline_mode = #tpu.pipeline_mode<synchronous>, transform_indices = @transform_3, window_bounds = array<i64: 4, 128>}, {transform_indices = @transform_4, window_bounds = array<i64: 1, 1, 200>}]} {
    %c0 = arith.constant 0 : index
    %c0_0 = arith.constant 0 : index
    %0 = vector.load %arg1[%c0, %c0_0] : memref<200x32xf32, #tpu.memory_space<vmem>>, vector<200x32xf32>
    %1 = arith.truncf %0 : vector<200x32xf32> to vector<200x32xbf16>
    %c0_1 = arith.constant 0 : index
    %c0_2 = arith.constant 0 : index
    %2 = vector.load %arg2[%c0_1, %c0_2] : memref<32x64xbf16, #tpu.memory_space<vmem>>, vector<32x64xbf16>
    %cst = arith.constant dense<0.000000e+00> : vector<200x64xf32>
    %3 = tpu.matmul %1, %2, %cst {dimension_numbers = #tpu.dot_dimension_numbers<[1], [0], [0], [1], [0, 0, 1, 1], [], []>} : vector<200x32xbf16>, vector<32x64xbf16>, vector<200x64xf32> -> vector<200x64xf32>
    %c0_3 = arith.constant 0 : index
    %c0_4 = arith.constant 0 : index
    %4 = vector.load %arg4[%c0_3, %c0_4] : memref<4x128xf32, #tpu.memory_space<vmem>>, vector<1x64xf32>
    %5 = vector.broadcast %4 : vector<1x64xf32> to vector<200x64xf32>
    %6 = arith.addf %3, %5 : vector<200x64xf32>
    %cst_5 = arith.constant 0.000000e+00 : f32
    %7 = vector.broadcast %cst_5 : f32 to vector<200x64xf32>
    %8 = arith.maximumf %6, %7 : vector<200x64xf32>
    %9 = arith.truncf %8 : vector<200x64xf32> to vector<200x64xbf16>
    %c0_6 = arith.constant 0 : index
    %c0_7 = arith.constant 0 : index
    %10 = vector.load %arg3[%c0_6, %c0_7] : memref<64x32xbf16, #tpu.memory_space<vmem>>, vector<64x32xbf16>
    %cst_8 = arith.constant dense<0.000000e+00> : vector<200x32xf32>
    %11 = tpu.matmul %9, %10, %cst_8 {dimension_numbers = #tpu.dot_dimension_numbers<[1], [0], [0], [1], [0, 0, 1, 1], [], []>} : vector<200x64xbf16>, vector<64x32xbf16>, vector<200x32xf32> -> vector<200x32xf32>
    %c1 = arith.constant 1 : index
    %c0_9 = arith.constant 0 : index
    %12 = vector.load %arg4[%c1, %c0_9] : memref<4x128xf32, #tpu.memory_space<vmem>>, vector<1x32xf32>
    %13 = vector.broadcast %12 : vector<1x32xf32> to vector<200x32xf32>
    %14 = arith.addf %11, %13 : vector<200x32xf32>
    %cst_10 = arith.constant 0.000000e+00 : f32
    %15 = vector.broadcast %cst_10 : f32 to vector<200x32xf32>
    %16 = arith.maximumf %14, %15 : vector<200x32xf32>
    %17 = arith.truncf %16 : vector<200x32xf32> to vector<200x32xbf16>
    %c2 = arith.constant 2 : index
    %c0_11 = arith.constant 0 : index
    %18 = vector.load %arg4[%c2, %c0_11] : memref<4x128xf32, #tpu.memory_space<vmem>>, vector<1x32xf32>
    %19 = arith.truncf %18 : vector<1x32xf32> to vector<1x32xbf16>
    %cst_12 = arith.constant dense<0.000000e+00> : vector<1x200xf32>
    %20 = tpu.matmul %19, %17, %cst_12 {dimension_numbers = #tpu.dot_dimension_numbers<[1], [1], [0], [0], [0, 0, 1, 0], [], []>} : vector<1x32xbf16>, vector<200x32xbf16>, vector<1x200xf32> -> vector<1x200xf32>
    %c3 = arith.constant 3 : index
    %c0_13 = arith.constant 0 : index
    %21 = vector.load %arg4[%c3, %c0_13] : memref<4x128xf32, #tpu.memory_space<vmem>>, vector<1x1xf32>
    %22 = vector.broadcast %21 : vector<1x1xf32> to vector<1x200xf32>
    %23 = arith.addf %20, %22 : vector<1x200xf32>
    %cst_14 = arith.constant 0.000000e+00 : f32
    %24 = vector.broadcast %cst_14 : f32 to vector<1x200xf32>
    %25 = arith.subf %24, %23 : vector<1x200xf32>
    %26 = math.exp %25 : vector<1x200xf32>
    %cst_15 = arith.constant 1.000000e+00 : f32
    %27 = vector.broadcast %cst_15 : f32 to vector<1x200xf32>
    %28 = arith.addf %27, %26 : vector<1x200xf32>
    %29 = tpu.reciprocal %28 : vector<1x200xf32> -> vector<1x200xf32>
    %30 = vector.shape_cast %29 : vector<1x200xf32> to vector<1x1x200xf32>
    %c0_16 = arith.constant 0 : index
    %c0_17 = arith.constant 0 : index
    %c0_18 = arith.constant 0 : index
    %31 = vector.load %arg5[%c0_16, %c0_17, %c0_18] : memref<1x1x200xf32, #tpu.memory_space<vmem>>, vector<1x1x200xf32>
    tpu.vector_store %arg5[%c0_16, %c0_17, %c0_18], %30 {strides = array<i32>} : memref<1x1x200xf32, #tpu.memory_space<vmem>>, vector<1x1x200xf32>,
    return
  }
  func.func @transform_0(%arg0: i32) -> (i32, i32) {
    %c0_i32 = arith.constant 0 : i32
    %c0_i32_0 = arith.constant 0 : i32
    return %arg0, %c0_i32 : i32, i32
  }
  func.func @transform_1(%arg0: i32) -> (i32, i32) {
    %c0_i32 = arith.constant 0 : i32
    %c0_i32_0 = arith.constant 0 : i32
    %c0_i32_1 = arith.constant 0 : i32
    return %c0_i32, %c0_i32_0 : i32, i32
  }
  func.func @transform_2(%arg0: i32) -> (i32, i32) {
    %c0_i32 = arith.constant 0 : i32
    %c0_i32_0 = arith.constant 0 : i32
    %c0_i32_1 = arith.constant 0 : i32
    return %c0_i32, %c0_i32_0 : i32, i32
  }
  func.func @transform_3(%arg0: i32) -> (i32, i32) {
    %c0_i32 = arith.constant 0 : i32
    %c0_i32_0 = arith.constant 0 : i32
    %c0_i32_1 = arith.constant 0 : i32
    return %c0_i32, %c0_i32_0 : i32, i32
  }
  func.func @transform_4(%arg0: i32) -> (i32, i32, i32) {
    %c0_i32 = arith.constant 0 : i32
    %c0_i32_0 = arith.constant 0 : i32
    %c0_i32_1 = arith.constant 0 : i32
    return %arg0, %c0_i32, %c0_i32_0 : i32, i32, i32
  }
}

</mosaic_0001>

<llo_original>
// kernel: tpu_custom_call.1
$region0: #{tpu_custom_call.1}
  #allocation0 [shape = 'u32[]', space=smem, size = 0x4, offset = 0x4, fixed_abs, tag = 'smem constant byte address 0x4 - core index']
  #allocation1 [shape = 'u32[72,128]{1,0:T(1,128)}', space=vmem, size = 0x9000, scoped, tag = 'internal scratch']
  %s0 = inlined_call_operand.vmem [shape: f32[200,32], index: 0, kind: input, shape index: {}]
  %s1 = inlined_call_operand.vmem [shape: bf16[32,64], index: 1, kind: input, shape index: {}]
  %s2 = inlined_call_operand.vmem [shape: bf16[64,32], index: 2, kind: input, shape index: {}]
  %s3 = inlined_call_operand.vmem [shape: f32[4,128], index: 3, kind: input, shape index: {}]
  %s4 = inlined_call_operand.hbm [shape: f32[1,1,200], index: 4, kind: output, shape index: {}]
  %s5 = sld [smem:[#allocation0]]
  $region26: #{tpu_custom_call.1} parent=0
    _
  %s7 = ssub.s32 1, %s5
  %s8 = scalar_select 0, %s7, %s5
  $region1: #{tpu_custom_call.1} parent=0
    #allocation2 [shape = 'u8[1024]{0}', space=vmem, size = 0x400, scoped, tag = 'output window, operand 0, single buffered']
    #allocation3 [shape = 's32[1]{0}', space=sflag, size = 0x4, scoped, tag = 'scoped memory for tpu_custom_call.1']
    %9 = vsyncpa [#allocation3], 0
    // Predicated region
    $region2: #{tpu_custom_call.1} parent=1 // pred_check
      _
    $region3: #{tpu_custom_call.1} parent=1 // pred_check_branch
      %11 = sbr.rel (0) target = $region5
    $region4: #{tpu_custom_call.1} parent=1 // pred_region
      _
    $region5: #{tpu_custom_call.1} parent=1 // pred_fallthru
      _
    // Predicated region
    $region6: #{tpu_custom_call.1} parent=1 // pred_check
      _
    $region7: #{tpu_custom_call.1} parent=1 // pred_check_branch
      %13 = sbr.rel (0) target = $region9
    $region8: #{tpu_custom_call.1} parent=1 // pred_region
      _
    $region9: #{tpu_custom_call.1} parent=1 // pred_fallthru
      _
    // Predicated region
    $region10: #{tpu_custom_call.1} parent=1 // pred_check
      _
    $region11: #{tpu_custom_call.1} parent=1 // pred_check_branch
      %15 = sbr.rel (0) target = $region13
    $region12: #{tpu_custom_call.1} parent=1 // pred_region
      _
    $region13: #{tpu_custom_call.1} parent=1 // pred_fallthru
      _
    // Predicated region
    $region14: #{tpu_custom_call.1} parent=1 // pred_check
      _
    $region15: #{tpu_custom_call.1} parent=1 // pred_check_branch
      %17 = sbr.rel (0) target = $region17
    $region16: #{tpu_custom_call.1} parent=1 // pred_region
      _
    $region17: #{tpu_custom_call.1} parent=1 // pred_fallthru
      _
    %v19 = vld [vmem:[%s0] sm:$0xff]
    %v20 = vld [vmem:[%s0 + $0x8] sm:$0xff]
    %v21 = vld [vmem:[%s0 + $0x10] sm:$0xff]
    %v22 = vld [vmem:[%s0 + $0x18] sm:$0xff]
    %v23 = vld [vmem:[%s0 + $0x20] sm:$0xff]
    %v24 = vld [vmem:[%s0 + $0x28] sm:$0xff]
    %v25 = vld [vmem:[%s0 + $0x30] sm:$0xff]
    %v26 = vld [vmem:[%s0 + $0x38] sm:$0xff]
    %v27 = vld [vmem:[%s0 + $0x40] sm:$0xff]
    %v28 = vld [vmem:[%s0 + $0x48] sm:$0xff]
    %v29 = vld [vmem:[%s0 + $0x50] sm:$0xff]
    %v30 = vld [vmem:[%s0 + $0x58] sm:$0xff]
    %v31 = vld [vmem:[%s0 + $0x60] sm:$0xff]
    %v32 = vld [vmem:[%s0 + $0x68] sm:$0xff]
    %v33 = vld [vmem:[%s0 + $0x70] sm:$0xff]
    %v34 = vld [vmem:[%s0 + $0x78] sm:$0xff]
    %v35 = vld [vmem:[%s0 + $0x80] sm:$0xff]
    %v36 = vld [vmem:[%s0 + $0x88] sm:$0xff]
    %v37 = vld [vmem:[%s0 + $0x90] sm:$0xff]
    %v38 = vld [vmem:[%s0 + $0x98] sm:$0xff]
    %v39 = vld [vmem:[%s0 + $0xa0] sm:$0xff]
    %v40 = vld [vmem:[%s0 + $0xa8] sm:$0xff]
    %v41 = vld [vmem:[%s0 + $0xb0] sm:$0xff]
    %v42 = vld [vmem:[%s0 + $0xb8] sm:$0xff]
    %v43 = vld [vmem:[%s0 + $0xc0] sm:$0xff]
    %v44 = vpack.c.bf16 %v20, %v19
    %v45 = vpack.c.bf16 %v22, %v21
    %v46 = vpack.c.bf16 %v24, %v23
    %v47 = vpack.c.bf16 %v26, %v25
    %v48 = vpack.c.bf16 %v28, %v27
    %v49 = vpack.c.bf16 %v30, %v29
    %v50 = vpack.c.bf16 %v32, %v31
    %v51 = vpack.c.bf16 %v34, %v33
    %v52 = vpack.c.bf16 %v36, %v35
    %v53 = vpack.c.bf16 %v38, %v37
    %v54 = vpack.c.bf16 %v40, %v39
    %v55 = vpack.c.bf16 %v42, %v41
    %v56 = vpack.c.bf16 %v43, %v43
    %v57 = vld [vmem:[%s1] sm:$0xf]
    %v58 = vld [vmem:[%s1 + $0x4] sm:$0xf]
    %v59 = vld [vmem:[%s1 + $0x8] sm:$0xf]
    %v60 = vld [vmem:[%s1 + $0xc] sm:$0xf]
    %v61 = vld [vmem:[%s3] sm:$0x1]
    %v62 = vperm.slane %v61, 0
    %v67 = vunpack.c.l.b16 %v57
    %v68 = vunpack.c.l.b16 %v58
    %v69 = vunpack.c.l.b16 %v59
    %v70 = vunpack.c.l.b16 %v60
    %v71 = vpack.c.b16 %v68, %v67
    %v72 = vpack.c.b16 %v70, %v69
    %vm75 = vcmask 261120
    %v77 = vsel %vm75, %v44, 0
    %v80 = vsel %vm75, %v45, 0
    %v83 = vsel %vm75, %v46, 0
    %v86 = vsel %vm75, %v47, 0
    %v89 = vsel %vm75, %v48, 0
    %v92 = vsel %vm75, %v49, 0
    %v95 = vsel %vm75, %v50, 0
    %v98 = vsel %vm75, %v51, 0
    %v101 = vsel %vm75, %v52, 0
    %v104 = vsel %vm75, %v53, 0
    %v107 = vsel %vm75, %v54, 0
    %v110 = vsel %vm75, %v55, 0
    %v113 = vsel %vm75, %v56, 0
    %115 = vmatpush.bf16.msra.mxu0 0
    %116 = vmatpush.bf16.msra.mxu0 0
    %117 = vmatpush.bf16.msra.mxu0 0
    %118 = vmatpush.bf16.msra.mxu0 0
    %119 = vmatpush.bf16.msra.mxu0 0
    %120 = vmatpush.bf16.msra.mxu0 0
    %121 = vmatpush.bf16.msra.mxu0 %v72
    %122 = vmatpush.bf16.msra.mxu0 %v71
    %123 = vmatmul.bf16.gmra.mxu0 %v77
    %v124 = vpop.f32.mrf.mxu0
    %v125 = vadd.f32 %v62, %v124
    %v126 = vpop.f32.mrf.mxu0
    %v127 = vadd.f32 %v62, %v126
    %128 = vmatmul.bf16.gmra.mxu0 %v80
    %v129 = vpop.f32.mrf.mxu0
    %v130 = vadd.f32 %v62, %v129
    %v131 = vpop.f32.mrf.mxu0
    %v132 = vadd.f32 %v62, %v131
    %133 = vmatmul.bf16.gmra.mxu0 %v83
    %v134 = vpop.f32.mrf.mxu0
    %v135 = vadd.f32 %v62, %v134
    %v136 = vpop.f32.mrf.mxu0
    %v137 = vadd.f32 %v62, %v136
    %138 = vmatmul.bf16.gmra.mxu0 %v86
    %v139 = vpop.f32.mrf.mxu0
    %v140 = vadd.f32 %v62, %v139
    %v141 = vpop.f32.mrf.mxu0
    %v142 = vadd.f32 %v62, %v141
    %143 = vmatmul.bf16.gmra.mxu0 %v89
    %v144 = vpop.f32.mrf.mxu0
    %v145 = vadd.f32 %v62, %v144
    %v146 = vpop.f32.mrf.mxu0
    %v147 = vadd.f32 %v62, %v146
    %148 = vmatmul.bf16.gmra.mxu0 %v92
    %v149 = vpop.f32.mrf.mxu0
    %v150 = vadd.f32 %v62, %v149
    %v151 = vpop.f32.mrf.mxu0
    %v152 = vadd.f32 %v62, %v151
    %153 = vmatmul.bf16.gmra.mxu0 %v95
    %v154 = vpop.f32.mrf.mxu0
    %v155 = vadd.f32 %v62, %v154
    %v156 = vpop.f32.mrf.mxu0
    %v157 = vadd.f32 %v62, %v156
    %158 = vmatmul.bf16.gmra.mxu0 %v98
    %v159 = vpop.f32.mrf.mxu0
    %v160 = vadd.f32 %v62, %v159
    %v161 = vpop.f32.mrf.mxu0
    %v162 = vadd.f32 %v62, %v161
    %163 = vmatmul.bf16.gmra.mxu0 %v101
    %v164 = vpop.f32.mrf.mxu0
    %v165 = vadd.f32 %v62, %v164
    %v166 = vpop.f32.mrf.mxu0
    %v167 = vadd.f32 %v62, %v166
    %168 = vmatmul.bf16.gmra.mxu0 %v104
    %v169 = vpop.f32.mrf.mxu0
    %v170 = vadd.f32 %v62, %v169
    %v171 = vpop.f32.mrf.mxu0
    %v172 = vadd.f32 %v62, %v171
    %173 = vmatmul.bf16.gmra.mxu0 %v107
    %v174 = vpop.f32.mrf.mxu0
    %v175 = vadd.f32 %v62, %v174
    %v176 = vpop.f32.mrf.mxu0
    %v177 = vadd.f32 %v62, %v176
    %178 = vmatmul.bf16.gmra.mxu0 %v110
    %v179 = vpop.f32.mrf.mxu0
    %v180 = vadd.f32 %v62, %v179
    %v181 = vpop.f32.mrf.mxu0
    %v182 = vadd.f32 %v62, %v181
    %183 = vmatmul.bf16.gmra.mxu0 %v113
    %v184 = vpop.f32.mrf.mxu0
    %v185 = vadd.f32 %v62, %v184
    %v186 = vpop.f32.mrf.mxu0
    %187 = vdwg.mxu0
    %v188 = vmax.f32 %v125, 0.0
    %v189 = vmax.f32 %v127, 0.0
    %v190 = vmax.f32 %v130, 0.0
    %v191 = vmax.f32 %v132, 0.0
    %v192 = vmax.f32 %v135, 0.0
    %v193 = vmax.f32 %v137, 0.0
    %v194 = vmax.f32 %v140, 0.0
    %v195 = vmax.f32 %v142, 0.0
    %v196 = vmax.f32 %v145, 0.0
    %v197 = vmax.f32 %v147, 0.0
    %v198 = vmax.f32 %v150, 0.0
    %v199 = vmax.f32 %v152, 0.0
    %v200 = vmax.f32 %v155, 0.0
    %v201 = vmax.f32 %v157, 0.0
    %v202 = vmax.f32 %v160, 0.0
    %v203 = vmax.f32 %v162, 0.0
    %v204 = vmax.f32 %v165, 0.0
    %v205 = vmax.f32 %v167, 0.0
    %v206 = vmax.f32 %v170, 0.0
    %v207 = vmax.f32 %v172, 0.0
    %v208 = vmax.f32 %v175, 0.0
    %v209 = vmax.f32 %v177, 0.0
    %v210 = vmax.f32 %v180, 0.0
    %v211 = vmax.f32 %v182, 0.0
    %v212 = vmax.f32 %v185, 0.0
    %v213 = vpack.c.bf16 %v189, %v188
    %v214 = vpack.c.bf16 %v191, %v190
    %v215 = vpack.c.bf16 %v193, %v192
    %v216 = vpack.c.bf16 %v195, %v194
    %v217 = vpack.c.bf16 %v197, %v196
    %v218 = vpack.c.bf16 %v199, %v198
    %v219 = vpack.c.bf16 %v201, %v200
    %v220 = vpack.c.bf16 %v203, %v202
    %v221 = vpack.c.bf16 %v205, %v204
    %v222 = vpack.c.bf16 %v207, %v206
    %v223 = vpack.c.bf16 %v209, %v208
    %v224 = vpack.c.bf16 %v211, %v210
    %v225 = vpack.c.bf16 %v212, %v212
    %v226 = vld [vmem:[%s2] sm:$0xf]
    %v227 = vld [vmem:[%s2 + $0x4] sm:$0xf]
    %v228 = vld [vmem:[%s2 + $0x8] sm:$0xf]
    %v229 = vld [vmem:[%s2 + $0xc] sm:$0xf]
    %v230 = vld [vmem:[%s2 + $0x10] sm:$0xf]
    %v231 = vld [vmem:[%s2 + $0x14] sm:$0xf]
    %v232 = vld [vmem:[%s2 + $0x18] sm:$0xf]
    %v233 = vld [vmem:[%s2 + $0x1c] sm:$0xf]
    %v234 = vld [vmem:[%s3 + $0x1] sm:$0x1]
    %v235 = vperm.slane %v234, 0
    %v244 = vunpack.c.l.b16 %v226
    %v245 = vunpack.c.l.b16 %v227
    %v246 = vunpack.c.l.b16 %v228
    %v247 = vunpack.c.l.b16 %v229
    %v248 = vunpack.c.l.b16 %v230
    %v249 = vunpack.c.l.b16 %v231
    %v250 = vunpack.c.l.b16 %v232
    %v251 = vunpack.c.l.b16 %v233
    %v252 = vpack.c.b16 %v245, %v244
    %v253 = vpack.c.b16 %v247, %v246
    %v254 = vpack.c.b16 %v249, %v248
    %v255 = vpack.c.b16 %v251, %v250
    %vm260 = vcmask 523264
    %v262 = vsel %vm260, %v213, 0
    %v265 = vsel %vm260, %v214, 0
    %v268 = vsel %vm260, %v215, 0
    %v271 = vsel %vm260, %v216, 0
    %v274 = vsel %vm260, %v217, 0
    %v277 = vsel %vm260, %v218, 0
    %v280 = vsel %vm260, %v219, 0
    %v283 = vsel %vm260, %v220, 0
    %v286 = vsel %vm260, %v221, 0
    %v289 = vsel %vm260, %v222, 0
    %v292 = vsel %vm260, %v223, 0
    %v295 = vsel %vm260, %v224, 0
    %v298 = vsel %vm260, %v225, 0
    %300 = vmatpush.bf16.msra.mxu0 0
    %301 = vmatpush.bf16.msra.mxu0 0
    %302 = vmatpush.bf16.msra.mxu0 0
    %303 = vmatpush.bf16.msra.mxu0 0
    %304 = vmatpush.bf16.msra.mxu0 %v255
    %305 = vmatpush.bf16.msra.mxu0 %v254
    %306 = vmatpush.bf16.msra.mxu0 %v253
    %307 = vmatpush.bf16.msra.mxu0 %v252
    %308 = vmatmul.bf16.gmra.mxu0 %v262
    %v309 = vpop.f32.mrf.mxu0
    %v310 = vadd.f32 %v235, %v309
    %v311 = vpop.f32.mrf.mxu0
    %v312 = vadd.f32 %v235, %v311
    %313 = vmatmul.bf16.gmra.mxu0 %v265
    %v314 = vpop.f32.mrf.mxu0
    %v315 = vadd.f32 %v235, %v314
    %v316 = vpop.f32.mrf.mxu0
    %v317 = vadd.f32 %v235, %v316
    %318 = vmatmul.bf16.gmra.mxu0 %v268
    %v319 = vpop.f32.mrf.mxu0
    %v320 = vadd.f32 %v235, %v319
    %v321 = vpop.f32.mrf.mxu0
    %v322 = vadd.f32 %v235, %v321
    %323 = vmatmul.bf16.gmra.mxu0 %v271
    %v324 = vpop.f32.mrf.mxu0
    %v325 = vadd.f32 %v235, %v324
    %v326 = vpop.f32.mrf.mxu0
    %v327 = vadd.f32 %v235, %v326
    %328 = vmatmul.bf16.gmra.mxu0 %v274
    %v329 = vpop.f32.mrf.mxu0
    %v330 = vadd.f32 %v235, %v329
    %v331 = vpop.f32.mrf.mxu0
    %v332 = vadd.f32 %v235, %v331
    %333 = vmatmul.bf16.gmra.mxu0 %v277
    %v334 = vpop.f32.mrf.mxu0
    %v335 = vadd.f32 %v235, %v334
    %v336 = vpop.f32.mrf.mxu0
    %v337 = vadd.f32 %v235, %v336
    %338 = vmatmul.bf16.gmra.mxu0 %v280
    %v339 = vpop.f32.mrf.mxu0
    %v340 = vadd.f32 %v235, %v339
    %v341 = vpop.f32.mrf.mxu0
    %v342 = vadd.f32 %v235, %v341
    %343 = vmatmul.bf16.gmra.mxu0 %v283
    %v344 = vpop.f32.mrf.mxu0
    %v345 = vadd.f32 %v235, %v344
    %v346 = vpop.f32.mrf.mxu0
    %v347 = vadd.f32 %v235, %v346
    %348 = vmatmul.bf16.gmra.mxu0 %v286
    %v349 = vpop.f32.mrf.mxu0
    %v350 = vadd.f32 %v235, %v349
    %v351 = vpop.f32.mrf.mxu0
    %v352 = vadd.f32 %v235, %v351
    %353 = vmatmul.bf16.gmra.mxu0 %v289
    %v354 = vpop.f32.mrf.mxu0
    %v355 = vadd.f32 %v235, %v354
    %v356 = vpop.f32.mrf.mxu0
    %v357 = vadd.f32 %v235, %v356
    %358 = vmatmul.bf16.gmra.mxu0 %v292
    %v359 = vpop.f32.mrf.mxu0
    %v360 = vadd.f32 %v235, %v359
    %v361 = vpop.f32.mrf.mxu0
    %v362 = vadd.f32 %v235, %v361
    %363 = vmatmul.bf16.gmra.mxu0 %v295
    %v364 = vpop.f32.mrf.mxu0
    %v365 = vadd.f32 %v235, %v364
    %v366 = vpop.f32.mrf.mxu0
    %v367 = vadd.f32 %v235, %v366
    %368 = vmatmul.bf16.gmra.mxu0 %v298
    %v369 = vpop.f32.mrf.mxu0
    %v370 = vadd.f32 %v235, %v369
    %v371 = vpop.f32.mrf.mxu0
    %372 = vdwg.mxu0
    %v373 = vmax.f32 %v310, 0.0
    %v374 = vmax.f32 %v312, 0.0
    %v375 = vmax.f32 %v315, 0.0
    %v376 = vmax.f32 %v317, 0.0
    %v377 = vmax.f32 %v320, 0.0
    %v378 = vmax.f32 %v322, 0.0
    %v379 = vmax.f32 %v325, 0.0
    %v380 = vmax.f32 %v327, 0.0
    %v381 = vmax.f32 %v330, 0.0
    %v382 = vmax.f32 %v332, 0.0
    %v383 = vmax.f32 %v335, 0.0
    %v384 = vmax.f32 %v337, 0.0
    %v385 = vmax.f32 %v340, 0.0
    %v386 = vmax.f32 %v342, 0.0
    %v387 = vmax.f32 %v345, 0.0
    %v388 = vmax.f32 %v347, 0.0
    %v389 = vmax.f32 %v350, 0.0
    %v390 = vmax.f32 %v352, 0.0
    %v391 = vmax.f32 %v355, 0.0
    %v392 = vmax.f32 %v357, 0.0
    %v393 = vmax.f32 %v360, 0.0
    %v394 = vmax.f32 %v362, 0.0
    %v395 = vmax.f32 %v365, 0.0
    %v396 = vmax.f32 %v367, 0.0
    %v397 = vmax.f32 %v370, 0.0
    %v398 = vpack.c.bf16 %v374, %v373
    %v399 = vpack.c.bf16 %v376, %v375
    %v400 = vpack.c.bf16 %v378, %v377
    %v401 = vpack.c.bf16 %v380, %v379
    %v402 = vpack.c.bf16 %v382, %v381
    %v403 = vpack.c.bf16 %v384, %v383
    %v404 = vpack.c.bf16 %v386, %v385
    %v405 = vpack.c.bf16 %v388, %v387
    %v406 = vpack.c.bf16 %v390, %v389
    %v407 = vpack.c.bf16 %v392, %v391
    %v408 = vpack.c.bf16 %v394, %v393
    %v409 = vpack.c.bf16 %v396, %v395
    %v410 = vpack.c.bf16 %v397, %v397
    %v411 = vld [vmem:[%s3 + $0x2] sm:$0x1]
    %v412 = vpack.c.bf16 %v411, %v411
    %v413 = vld [vmem:[%s3 + $0x3] sm:$0x1]
    %415 = vset.pattern.permute.xlu0 0
    %416 = vperm.xlu0 %415, %v413
    %v417 = vpop.permute.xlu0 %416
    %v420 = vsel %vm75, %v412, 0
    %v423 = vsel %vm75, %v398, 0
    %v426 = vsel %vm75, %v399, 0
    %v429 = vsel %vm75, %v400, 0
    %v432 = vsel %vm75, %v401, 0
    %v435 = vsel %vm75, %v402, 0
    %v438 = vsel %vm75, %v403, 0
    %v441 = vsel %vm75, %v404, 0
    %v444 = vsel %vm75, %v405, 0
    %v447 = vsel %vm75, %v406, 0
    %v450 = vsel %vm75, %v407, 0
    %v453 = vsel %vm75, %v408, 0
    %v456 = vsel %vm75, %v409, 0
    %v459 = vsel %vm75, %v410, 0
    %461 = vmatpush.bf16.xpose.msra.mxu0 %v444
    %462 = vmatpush.bf16.xpose.msra.mxu0 %v441
    %463 = vmatpush.bf16.xpose.msra.mxu0 %v438
    %464 = vmatpush.bf16.xpose.msra.mxu0 %v435
    %465 = vmatpush.bf16.xpose.msra.mxu0 %v432
    %466 = vmatpush.bf16.xpose.msra.mxu0 %v429
    %467 = vmatpush.bf16.xpose.msra.mxu0 %v426
    %468 = vmatpush.bf16.xpose.msra.mxu0 %v423
    %469 = vmatmul.bf16.gmra.mxu0 %v420
    %v470 = vpop.f32.mrf.mxu0
    %v471 = vadd.f32 %v417, %v470
    %v472 = vpop.f32.mrf.mxu0
    %473 = vdwg.mxu0
    %474 = vmatpush.bf16.xpose.msra.mxu0 0
    %475 = vmatpush.bf16.xpose.msra.mxu0 0
    %476 = vmatpush.bf16.xpose.msra.mxu0 0
    %477 = vmatpush.bf16.xpose.msra.mxu0 %v459
    %478 = vmatpush.bf16.xpose.msra.mxu0 %v456
    %479 = vmatpush.bf16.xpose.msra.mxu0 %v453
    %480 = vmatpush.bf16.xpose.msra.mxu0 %v450
    %481 = vmatpush.bf16.xpose.msra.mxu0 %v447
    %482 = vmatmul.bf16.gmra.mxu0 %v420
    %v483 = vpop.f32.mrf.mxu0
    %v484 = vadd.f32 %v417, %v483
    %v485 = vpop.f32.mrf.mxu0
    %486 = vdwg.mxu0
    %v487 = vsub.f32 0.0, %v471
    %v488 = vsub.f32 0.0, %v484
    %v489 = vmul.f32 %v487, 1.442695
    %v490 = vpow.pop %v489
    %v491 = vmul.f32 %v488, 1.442695
    %v492 = vpow.pop %v491
    %v493 = vadd.f32 %v490, 1.0
    %v494 = vadd.f32 %v492, 1.0
    %v495 = vrcp.pop %v493
    %v496 = vmul.f32 %v493, %v495
    %v497 = vsub.f32 1.0, %v496
    %v498 = vmul.f32 %v495, %v497
    %v499 = vadd.f32 %v495, %v498
    %vm500 = vweird.f32 %v493
    %vm501 = vweird.f32 %v495
    %vm502 = vmor %vm500, %vm501
    %v503 = vsel %vm502, %v495, %v499
    %v504 = vand.u32 2147483647, %v493
    %vm505 = vcmp.eq.f32.partialorder %v504, 8.507059e+37
    %v506 = vand.u32 %v493, 2147483648
    %v507 = vor.u32 1.1754944e-38, %v506
    %v508 = vsel %vm505, %v507, %v503
    %v509 = vrcp.pop %v494
    %v510 = vmul.f32 %v494, %v509
    %v511 = vsub.f32 1.0, %v510
    %v512 = vmul.f32 %v509, %v511
    %v513 = vadd.f32 %v509, %v512
    %vm514 = vweird.f32 %v494
    %vm515 = vweird.f32 %v509
    %vm516 = vmor %vm514, %vm515
    %v517 = vsel %vm516, %v509, %v513
    %v518 = vand.u32 2147483647, %v494
    %vm519 = vcmp.eq.f32.partialorder %v518, 8.507059e+37
    %v520 = vand.u32 %v494, 2147483648
    %v521 = vor.u32 1.1754944e-38, %v520
    %v522 = vsel %vm519, %v521, %v517
    %v525 = vrot.slane %v522, 7
    %vm526 = vcmask 1040384
    %v527 = vsel %vm526, %v508, %v525
    %v529 = vlaneseq
    %vm530 = vcmp.ge.s32.totalorder %v529, 0
    %vm531 = vcmp.lt.s32.totalorder %v529, 200
    %vm532 = vmand %vm530, %vm531
    %533 = vst.msk [vmem:[#allocation2] sm:$0x3] %vm532, %v527
    // Predicated region
    $region18: #{tpu_custom_call.1} parent=1 // pred_check
      _
    $region19: #{tpu_custom_call.1} parent=1 // pred_check_branch
      %535 = sbr.rel (0) target = $region21
    $region20: #{tpu_custom_call.1} parent=1 // pred_region
      %537 = vsyncadd [#allocation3], 0
      %s539 = sshll.u32 [#allocation2], 4
      %s540 = int_to_ptr.vmem [resolvable:$true] %s539
      %s541 = sshll.u32 %s4, 4
      %s542 = int_to_ptr.hbm [resolvable:$true] %s541
      %544 = dma.vmem_to_hbm [thread:$0]  %s540, 32, %s542, [#allocation3]
    $region21: #{tpu_custom_call.1} parent=1 // pred_fallthru
      _
    // Predicated region
    $region22: #{tpu_custom_call.1} parent=1 // pred_check
      _
    $region23: #{tpu_custom_call.1} parent=1 // pred_check_branch
      %546 = sbr.rel (0) target = $region25
    $region24: #{tpu_custom_call.1} parent=1 // pred_region
      %548 = dma.done [#allocation3], 32
    $region25: #{tpu_custom_call.1} parent=1 // pred_fallthru
      _
    %549 = vsyncpa [#allocation3], 1

</llo_original>
